<compile_context>
chip_gen: v5e
topology: v5e:2x2
jax: 0.10.0
libtpu: 0.0.40
codegen_flags: <defaults>
</compile_context>

<pallas_src>
import jax
import jax.numpy as jnp
from jax.experimental import pallas as pl
from jax.experimental.pallas import tpu as pltpu


# ---------------------------------------------------------------------------
# Kernel: identity copy of one (tile_r, cols) block resident in VMEM.
# ---------------------------------------------------------------------------
def _identity_copy_kernel(x_ref, o_ref):
    o_ref[...] = x_ref[...]


_SMALL_BYTES = 1 << 20   # <= 1 MiB: latency-bound -> single block, no tiling.
_BLOCK_BYTES = 4 << 20   # ~4 MiB per block; with in+out each double-buffered
                         # that is <= 16 MiB live VMEM -> fits v7x's 32 MiB
                         # scoped default (ample headroom on v5e/v6e).


def _choose_slab(n):
    """Pick a lane/sublane-dense 2-D view (rows, cols) of a length-n array.

    cols is a multiple of 128 (lane-dense, unmasked vst) and rows a multiple
    of 8 (full 8-sublane vreg occupancy).  Returns None if no such
    factorization exists.
    """
    for cols in (2048, 1024, 512, 256, 128):
        if n % cols == 0:
            rows = n // cols
            if rows % 8 == 0:
                return rows, cols
    return None


def _identity_copy(x):
    """Materializing HBM->VMEM->HBM copy of `x` via a Pallas kernel."""
    n = x.size
    itemsize = jnp.dtype(x.dtype).itemsize
    total_bytes = n * itemsize

    slab = _choose_slab(n)
    if slab is None:
        # Degenerate sizes: whole-array single block.  block == full array
        # dims is always legal w.r.t. the (8,128) divisibility rule.
        rows, cols = 1, n
    else:
        rows, cols = slab

    flat = x.reshape(rows, cols)  # metadata-only

    if slab is None or total_bytes <= _SMALL_BYTES:
        # Small input: one block, no tiling -- the ~0.35 us per-step overhead
        # would dominate a tiled copy at this size.
        tile_r = rows
        grid = (1,)
        semantics = ("arbitrary",)
    else:
        # Tile over rows so Pallas double-buffers and overlaps input DMA /
        # copy / output DMA.  tile_r is a multiple of 8 that divides rows and
        # keeps the block under the cross-generation VMEM budget.
        max_rows = max(8, (_BLOCK_BYTES // (cols * itemsize)) // 8 * 8)
        tile_r = min(rows, max_rows)
        while rows % tile_r != 0:
            tile_r -= 8
        grid = (rows // tile_r,)
        # "parallel": shards the copy across both TensorCores on v7x;
        # harmless no-op on single-core v5e/v6e.
        semantics = ("parallel",)

    out_flat = pl.pallas_call(
        _identity_copy_kernel,
        out_shape=jax.ShapeDtypeStruct((rows, cols), flat.dtype),
        grid_spec=pltpu.PrefetchScalarGridSpec(
            num_scalar_prefetch=0,
            grid=grid,
            in_specs=[pl.BlockSpec((tile_r, cols), lambda i: (i, 0))],
            out_specs=pl.BlockSpec((tile_r, cols), lambda i: (i, 0)),
        ),
        # Pure data movement: alias output onto the input buffer (no second
        # HBM allocation when donated) and tell XLA this custom call is
        # 0-FLOP / bandwidth-only so it schedules around it correctly.
        input_output_aliases={0: 0},
        cost_estimate=pl.CostEstimate(
            flops=0, transcendentals=0, bytes_accessed=2 * total_bytes),
        compiler_params=pltpu.CompilerParams(dimension_semantics=semantics),
    )(flat)

    return out_flat.reshape(x.shape)  # metadata-only


# ---------------------------------------------------------------------------
# Debug module forward.
# ---------------------------------------------------------------------------
def debug_forward(x, lambd=None, materialize=False):
    """Equivalent of torch `Debug(lambd).forward(x)`.

    Runs `lambd(x)` for its side effect and returns `x` unchanged.  The data
    path is an identity (metadata-only), so by default no kernel and no HBM
    traffic.  `materialize=True` forces a physical round trip through the
    Pallas identity-copy kernel.
    """
    if lambd is not None:
        # TODO(synk): an arbitrary Python lambda has no on-device Pallas
        # equivalent; it runs host-side (trace time), exactly like a debug
        # hook.  Use pl.debug_print inside a kernel for on-device values.
        lambd(x)
    if not materialize:
        return x
    return _identity_copy(x)


if __name__ == "__main__":
    key = jax.random.PRNGKey(0)
    # Small NCHW input consistent with a typical conv feature map.
    B, C, H, W = 2, 4, 16, 16
    x = jax.random.normal(key, (B, C, H, W), dtype=jnp.float32)

    # Side-effect-only debug hook (no printing, so stdout stays clean).
    seen = []
    lambd = lambda t: seen.append(tuple(t.shape))

    ref = x  # Debug.forward(x) == x

    # materialize=True so the Pallas kernel is actually exercised on TPU.
    out = debug_forward(x, lambd, materialize=True)
    out = jax.block_until_ready(out)

    assert seen == [(B, C, H, W)], seen           # lambda side effect happened
    assert out.shape == ref.shape, out.shape
    assert out.dtype == ref.dtype
    assert bool(jnp.array_equal(out, ref))        # bit-exact identity

    # Default (fast) path: metadata-only identity, no kernel.
    out_fast = debug_forward(x, lambd=None, materialize=False)
    assert bool(jnp.array_equal(out_fast, ref))

    print("KERNEL_OK")
</pallas_src>

<mosaic_0001>
module attributes {stable_mosaic.version = 11 : i64} {
  func.func @_identity_copy_kernel(%arg0: i32, %arg1: memref<8x256xf32, #tpu.memory_space<vmem>>, %arg2: memref<8x256xf32, #tpu.memory_space<vmem>>) attributes {dimension_semantics = [#tpu.dimension_semantics<arbitrary>], iteration_bounds = array<i64: 1>, scalar_prefetch = 0 : i64, scratch_operands = 0 : i64, tpu.core_type = #tpu.core_type<tc>, window_params = [{transform_indices = @transform_0, window_bounds = array<i64: 8, 256>}, {transform_indices = @transform_1, window_bounds = array<i64: 8, 256>}]} {
    %c0 = arith.constant 0 : index
    %c0_0 = arith.constant 0 : index
    %0 = vector.load %arg1[%c0, %c0_0] : memref<8x256xf32, #tpu.memory_space<vmem>>, vector<8x256xf32>
    %c0_1 = arith.constant 0 : index
    %c0_2 = arith.constant 0 : index
    %1 = vector.load %arg2[%c0_1, %c0_2] : memref<8x256xf32, #tpu.memory_space<vmem>>, vector<8x256xf32>
    tpu.vector_store %arg2[%c0_1, %c0_2], %0 {strides = array<i32>} : memref<8x256xf32, #tpu.memory_space<vmem>>, vector<8x256xf32>,
    return
  }
  func.func @transform_0(%arg0: i32) -> (i32, i32) {
    %c0_i32 = arith.constant 0 : i32
    %c0_i32_0 = arith.constant 0 : i32
    return %arg0, %c0_i32 : i32, i32
  }
  func.func @transform_1(%arg0: i32) -> (i32, i32) {
    %c0_i32 = arith.constant 0 : i32
    %c0_i32_0 = arith.constant 0 : i32
    return %arg0, %c0_i32 : i32, i32
  }
}

</mosaic_0001>

<llo_original>
// kernel: tpu_custom_call.1
$region0: #{tpu_custom_call.1}
  #allocation0 [shape = 'u32[]', space=smem, size = 0x4, offset = 0x4, fixed_abs, tag = 'smem constant byte address 0x4 - core index']
  #allocation1 [shape = 'u32[72,128]{1,0:T(1,128)}', space=vmem, size = 0x9000, scoped, tag = 'internal scratch']
  %s0 = inlined_call_operand.hbm [shape: f32[8,256], index: 0, kind: input, shape index: {}, may-alias: {0,1}]
  %s1 = inlined_call_operand.hbm [shape: f32[8,256], index: 1, kind: output, shape index: {}, may-alias: {0,1}]
  %s2 = sld [smem:[#allocation0]]
  $region18: #{tpu_custom_call.1} parent=0
    _
  %s4 = ssub.s32 1, %s2
  %s5 = scalar_select 0, %s4, %s2
  $region1: #{tpu_custom_call.1} parent=0
    #allocation2 [shape = 'u8[8192]{0}', space=vmem, size = 0x2000, scoped, tag = 'input window, operand 0, single buffered']
    #allocation3 [shape = 's32[1]{0}', space=sflag, size = 0x4, scoped, tag = 'scoped memory for tpu_custom_call.1']
    #allocation4 [shape = 's32[1]{0}', space=sflag, size = 0x4, scoped, tag = 'scoped memory for tpu_custom_call.1']
    #allocation5 [shape = 'u8[8192]{0}', space=vmem, size = 0x2000, scoped, tag = 'output window, operand 0, single buffered']
    %6 = vsyncpa [#allocation3], 0
    %7 = vsyncpa [#allocation4], 0
    // Predicated region
    $region2: #{tpu_custom_call.1} parent=1 // pred_check
      _
    $region3: #{tpu_custom_call.1} parent=1 // pred_check_branch
      %9 = sbr.rel (0) target = $region5
    $region4: #{tpu_custom_call.1} parent=1 // pred_region
      %11 = vsyncadd [#allocation3], 0
      %s13 = sshll.u32 %s0, 4
      %s14 = int_to_ptr.hbm [resolvable:$true] %s13
      %s15 = sshll.u32 [#allocation2], 4
      %s16 = int_to_ptr.vmem [resolvable:$true] %s15
      %18 = dma.hbm_to_vmem [thread:$0]  %s14, 256, %s16, [#allocation3]
    $region5: #{tpu_custom_call.1} parent=1 // pred_fallthru
      _
    // Predicated region
    $region6: #{tpu_custom_call.1} parent=1 // pred_check
      _
    $region7: #{tpu_custom_call.1} parent=1 // pred_check_branch
      %20 = sbr.rel (0) target = $region9
    $region8: #{tpu_custom_call.1} parent=1 // pred_region
      %22 = dma.done [#allocation3], 256
    $region9: #{tpu_custom_call.1} parent=1 // pred_fallthru
      _
    %v23 = vld [vmem:[#allocation2] sm:$0xff]
    %v24 = vld [vmem:[#allocation2 + $0x8] sm:$0xff]
    %25 = vst [vmem:[#allocation5] sm:$0xff] %v23
    %26 = vst [vmem:[#allocation5 + $0x8] sm:$0xff] %v24
    // Predicated region
    $region10: #{tpu_custom_call.1} parent=1 // pred_check
      _
    $region11: #{tpu_custom_call.1} parent=1 // pred_check_branch
      %28 = sbr.rel (0) target = $region13
    $region12: #{tpu_custom_call.1} parent=1 // pred_region
      %30 = vsyncadd [#allocation4], 0
      %s32 = sshll.u32 [#allocation5], 4
      %s33 = int_to_ptr.vmem [resolvable:$true] %s32
      %s34 = sshll.u32 %s1, 4
      %s35 = int_to_ptr.hbm [resolvable:$true] %s34
      %37 = dma.vmem_to_hbm [thread:$0]  %s33, 256, %s35, [#allocation4]
    $region13: #{tpu_custom_call.1} parent=1 // pred_fallthru
      _
    // Predicated region
    $region14: #{tpu_custom_call.1} parent=1 // pred_check
      _
    $region15: #{tpu_custom_call.1} parent=1 // pred_check_branch
      %39 = sbr.rel (0) target = $region17
    $region16: #{tpu_custom_call.1} parent=1 // pred_region
      %41 = dma.done [#allocation4], 256
    $region17: #{tpu_custom_call.1} parent=1 // pred_fallthru
      _
    %42 = vsyncpa [#allocation3], 1
    %43 = vsyncpa [#allocation4], 1

</llo_original>
